<compile_context>
chip_gen: v5e
topology: v5e:2x2
jax: 0.10.0
libtpu: 0.0.40
codegen_flags: <defaults>
</compile_context>

<pallas_src>
import jax
import jax.numpy as jnp
from jax.experimental import pallas as pl
from jax.experimental.pallas import tpu as pltpu


def _text_embed_kernel(bounds_ref, emb_ref, out_ref):
    # bounds_ref : (1, 2, K) int32    row 0 = lo, row 1 = hi (half-open windows)
    # emb_ref    : (1, K, D) bfloat16 gated hi/lo-split embedding rows
    # out_ref    : (1, TILE_S, D) float32
    si = pl.program_id(1)
    tile_s = out_ref.shape[1]

    pos = jax.lax.broadcasted_iota(jnp.int32, (tile_s, 1), 0) + si * tile_s  # [TILE_S, 1]
    b = bounds_ref[0]          # [2, K]
    lo = b[0:1, :]             # [1, K]
    hi = b[1:2, :]             # [1, K]

    # One fused half-open-window mask, one bf16 MXU pass, direct store.
    mask = ((pos >= lo) & (pos < hi)).astype(jnp.bfloat16)                   # [TILE_S, K]
    out_ref[0] = jnp.dot(mask, emb_ref[0], preferred_element_type=jnp.float32)


def text_embedding2_forward(x, e_ing_table, e_start_table, e_end_table,
                            *, seq_len=2048, tile_s=None):
    """x: [B, A, 3] float32.  Returns [B, seq_len, 512] float32."""
    B, A, _ = x.shape
    num_labels, D = e_ing_table.shape

    if tile_s is None:
        tile_s = min(seq_len, 2048)
        # v7x has 2 TensorCores: keep at least 2 parallel grid steps in total.
        while B * (seq_len // tile_s) < 2 and tile_s % 2 == 0 and tile_s > 8:
            tile_s //= 2
    assert seq_len % tile_s == 0

    # --- glue: per-action scalars + label gather (tiny) ---------------------
    start_idx = jnp.clip((x[..., 0] * seq_len).astype(jnp.int32), 0, seq_len - 1)  # [B, A]
    end_idx = jnp.clip((x[..., 1] * seq_len).astype(jnp.int32), 0, seq_len - 1)    # [B, A]
    label = x[..., 2].astype(jnp.int32)                                            # [B, A]

    # Gate = valid interval AND label present in the table (dict .get default 0).
    gate = ((start_idx < end_idx) &
            (label >= 0) & (label < num_labels)).astype(jnp.float32)               # [B, A]
    label_c = jnp.clip(label, 0, num_labels - 1)

    # Fused, pre-gated embedding rows: [B, 3A, D] f32 (ing | start | end).
    e_cat = jnp.concatenate(
        [e_ing_table[label_c], e_start_table[label_c], e_end_table[label_c]],
        axis=1) * jnp.tile(gate, (1, 3))[..., None]

    # bf16 hi/lo split -> one bf16 MXU pass with ~f32 accuracy.
    e_hi = e_cat.astype(jnp.bfloat16)
    e_lo = (e_cat - e_hi.astype(jnp.float32)).astype(jnp.bfloat16)
    emb = jnp.concatenate([e_hi, e_lo], axis=1)                                    # [B, 6A, D] bf16

    # Half-open windows [lo, hi) per fused row, duplicated for the lo half.
    lo3 = jnp.concatenate([start_idx, start_idx, end_idx], axis=1)                 # [B, 3A]
    hi3 = jnp.concatenate([end_idx, start_idx + 1, end_idx + 1], axis=1)           # [B, 3A]
    lo = jnp.tile(lo3, (1, 2))                                                     # [B, 6A]
    hi = jnp.tile(hi3, (1, 2))                                                     # [B, 6A]

    # Pad the fused action axis to a multiple of 8 (aligned sublane layout).
    K0 = 6 * A
    K = max(8, ((K0 + 7) // 8) * 8)
    if K != K0:
        pad = K - K0
        emb = jnp.pad(emb, ((0, 0), (0, pad), (0, 0)))
        lo = jnp.pad(lo, ((0, 0), (0, pad)), constant_values=seq_len)
        hi = jnp.pad(hi, ((0, 0), (0, pad)), constant_values=0)

    bounds = jnp.stack([lo, hi], axis=1).astype(jnp.int32)                         # [B, 2, K]

    grid = (B, seq_len // tile_s)
    bounds_spec = pl.BlockSpec((1, 2, K), lambda b, s: (b, 0, 0))
    emb_spec = pl.BlockSpec((1, K, D), lambda b, s: (b, 0, 0))
    out_spec = pl.BlockSpec((1, tile_s, D), lambda b, s: (b, s, 0))

    cost = pl.CostEstimate(
        flops=2 * B * seq_len * K * D,
        transcendentals=0,
        bytes_accessed=B * seq_len * D * 4 + B * K * D * 2 + B * 2 * K * 4,
    )

    return pl.pallas_call(
        _text_embed_kernel,
        out_shape=jax.ShapeDtypeStruct((B, seq_len, D), jnp.float32),
        grid_spec=pltpu.PrefetchScalarGridSpec(
            num_scalar_prefetch=0,
            grid=grid,
            in_specs=[bounds_spec, emb_spec],
            out_specs=out_spec,
        ),
        compiler_params=pltpu.CompilerParams(
            dimension_semantics=("parallel", "parallel"),
            vmem_limit_bytes=32 * 1024 * 1024,
        ),
        cost_estimate=cost,
    )(bounds, emb)


def _reference(x, e_ing_table, e_start_table, e_end_table, *, seq_len):
    # Pure-JAX reference mirroring the PyTorch loop semantics (no MXU: exact f32).
    num_labels, D = e_ing_table.shape
    start_idx = jnp.clip((x[..., 0] * seq_len).astype(jnp.int32), 0, seq_len - 1)
    end_idx = jnp.clip((x[..., 1] * seq_len).astype(jnp.int32), 0, seq_len - 1)
    label = x[..., 2].astype(jnp.int32)
    valid = (start_idx < end_idx)
    in_table = ((label >= 0) & (label < num_labels)).astype(jnp.float32)
    label_c = jnp.clip(label, 0, num_labels - 1)
    e_ing = e_ing_table[label_c] * in_table[..., None]
    e_start = e_start_table[label_c] * in_table[..., None]
    e_end = e_end_table[label_c] * in_table[..., None]

    pos = jnp.arange(seq_len)[None, :, None]          # [1, S, 1]
    s = start_idx[:, None, :]                          # [B, 1, A]
    e = end_idx[:, None, :]
    v = valid[:, None, :]
    m_ing = (((pos >= s) & (pos < e)) & v).astype(jnp.float32)   # [B, S, A]
    m_s = (((pos == s)) & v).astype(jnp.float32)
    m_e = (((pos == e)) & v).astype(jnp.float32)
    out = (m_ing[..., None] * e_ing[:, None, :, :]).sum(axis=2)
    out += (m_s[..., None] * e_start[:, None, :, :]).sum(axis=2)
    out += (m_e[..., None] * e_end[:, None, :, :]).sum(axis=2)
    return out


if __name__ == "__main__":
    B, A = 2, 4          # batch, (padded) number of actions
    SEQ_LEN = 256        # small stand-in for the module's 2048
    D = 512              # CLIP text embedding dim (fixed by the module)
    NUM_LABELS = 10

    key = jax.random.PRNGKey(0)
    k_emb_i, k_emb_s, k_emb_e, k_start, k_dur, k_lab = jax.random.split(key, 6)

    # Deterministic synthetic "precomputed CLIP text embeddings".
    e_ing_table = jax.random.normal(k_emb_i, (NUM_LABELS, D), dtype=jnp.float32)
    e_start_table = jax.random.normal(k_emb_s, (NUM_LABELS, D), dtype=jnp.float32)
    e_end_table = jax.random.normal(k_emb_e, (NUM_LABELS, D), dtype=jnp.float32)

    # Synthetic action annotations: (start_frac, end_frac, label).
    start_frac = jax.random.uniform(k_start, (B, A), minval=0.0, maxval=0.5)
    end_frac = start_frac + jax.random.uniform(k_dur, (B, A), minval=0.05, maxval=0.45)
    labels = jax.random.randint(k_lab, (B, A), 0, NUM_LABELS).astype(jnp.float32)
    # Exercise the dict .get(label, 0) path: one label not in the table.
    labels = labels.at[0, 0].set(float(NUM_LABELS + 5))
    x = jnp.stack([start_frac, end_frac, labels], axis=-1)   # [B, A, 3] float32

    out = text_embedding2_forward(x, e_ing_table, e_start_table, e_end_table,
                                  seq_len=SEQ_LEN)
    out = jax.block_until_ready(out)

    ref = _reference(x, e_ing_table, e_start_table, e_end_table, seq_len=SEQ_LEN)
    assert out.shape == (B, SEQ_LEN, D) and out.dtype == jnp.float32
    assert jnp.allclose(out, ref, atol=5e-4, rtol=5e-4)

    print("KERNEL_OK")
</pallas_src>

<mosaic_0001>
module attributes {stable_mosaic.version = 11 : i64} {
  func.func @_text_embed_kernel(%arg0: i32, %arg1: i32, %arg2: memref<1x2x24xi32, #tpu.memory_space<vmem>>, %arg3: memref<1x24x512xbf16, #tpu.memory_space<vmem>>, %arg4: memref<1x256x512xf32, #tpu.memory_space<vmem>>) attributes {dimension_semantics = [#tpu.dimension_semantics<parallel>, #tpu.dimension_semantics<parallel>], iteration_bounds = array<i64: 2, 1>, scalar_prefetch = 0 : i64, scratch_operands = 0 : i64, tpu.core_type = #tpu.core_type<tc>, window_params = [{transform_indices = @transform_0, window_bounds = array<i64: 1, 2, 24>}, {transform_indices = @transform_1, window_bounds = array<i64: 1, 24, 512>}, {transform_indices = @transform_2, window_bounds = array<i64: 1, 256, 512>}]} {
    %0 = tpu.iota {dimensions = array<i32: 0>} : vector<256x1xi32>
    %c256_i32 = arith.constant 256 : i32
    %1 = arith.muli %arg1, %c256_i32 : i32
    %2 = vector.broadcast %1 : i32 to vector<256x1xi32>
    %3 = arith.addi %0, %2 : vector<256x1xi32>
    %c0 = arith.constant 0 : index
    %c0_0 = arith.constant 0 : index
    %c0_1 = arith.constant 0 : index
    %4 = vector.load %arg2[%c0, %c0_0, %c0_1] : memref<1x2x24xi32, #tpu.memory_space<vmem>>, vector<1x2x24xi32>
    %5 = vector.shape_cast %4 : vector<1x2x24xi32> to vector<2x24xi32>
    %6 = vector.extract_strided_slice %5 {offsets = [0, 0], sizes = [1, 24], strides = [1, 1]} : vector<2x24xi32> to vector<1x24xi32>
    %7 = vector.extract_strided_slice %5 {offsets = [1, 0], sizes = [1, 24], strides = [1, 1]} : vector<2x24xi32> to vector<1x24xi32>
    %8 = vector.broadcast %3 : vector<256x1xi32> to vector<256x24xi32>
    %9 = vector.broadcast %6 : vector<1x24xi32> to vector<256x24xi32>
    %10 = arith.cmpi sge, %8, %9 : vector<256x24xi32>
    %11 = vector.broadcast %3 : vector<256x1xi32> to vector<256x24xi32>
    %12 = vector.broadcast %7 : vector<1x24xi32> to vector<256x24xi32>
    %13 = arith.cmpi slt, %11, %12 : vector<256x24xi32>
    %14 = arith.andi %10, %13 : vector<256x24xi1>
    %15 = arith.extui %14 : vector<256x24xi1> to vector<256x24xi32>
    %16 = arith.sitofp %15 : vector<256x24xi32> to vector<256x24xf32>
    %17 = arith.truncf %16 : vector<256x24xf32> to vector<256x24xbf16>
    %c0_2 = arith.constant 0 : index
    %c0_3 = arith.constant 0 : index
    %c0_4 = arith.constant 0 : index
    %18 = vector.load %arg3[%c0_2, %c0_3, %c0_4] : memref<1x24x512xbf16, #tpu.memory_space<vmem>>, vector<1x24x512xbf16>
    %19 = vector.shape_cast %18 : vector<1x24x512xbf16> to vector<24x512xbf16>
    %cst = arith.constant dense<0.000000e+00> : vector<256x512xf32>
    %20 = tpu.matmul %17, %19, %cst {dimension_numbers = #tpu.dot_dimension_numbers<[1], [0], [0], [1], [0, 0, 1, 1], [], []>} : vector<256x24xbf16>, vector<24x512xbf16>, vector<256x512xf32> -> vector<256x512xf32>
    %c0_5 = arith.constant 0 : index
    %c0_6 = arith.constant 0 : index
    %c0_7 = arith.constant 0 : index
    %21 = vector.load %arg4[%c0_5, %c0_6, %c0_7] : memref<1x256x512xf32, #tpu.memory_space<vmem>>, vector<1x256x512xf32>
    %22 = vector.shape_cast %21 : vector<1x256x512xf32> to vector<256x512xf32>
    %23 = vector.shape_cast %20 : vector<256x512xf32> to vector<1x256x512xf32>
    tpu.vector_store %arg4[%c0_5, %c0_6, %c0_7], %23 {strides = array<i32>} : memref<1x256x512xf32, #tpu.memory_space<vmem>>, vector<1x256x512xf32>,
    return
  }
  func.func @transform_0(%arg0: i32, %arg1: i32) -> (i32, i32, i32) {
    %c0_i32 = arith.constant 0 : i32
    %c0_i32_0 = arith.constant 0 : i32
    %c0_i32_1 = arith.constant 0 : i32
    return %arg0, %c0_i32, %c0_i32_0 : i32, i32, i32
  }
  func.func @transform_1(%arg0: i32, %arg1: i32) -> (i32, i32, i32) {
    %c0_i32 = arith.constant 0 : i32
    %c0_i32_0 = arith.constant 0 : i32
    %c0_i32_1 = arith.constant 0 : i32
    return %arg0, %c0_i32, %c0_i32_0 : i32, i32, i32
  }
  func.func @transform_2(%arg0: i32, %arg1: i32) -> (i32, i32, i32) {
    %c0_i32 = arith.constant 0 : i32
    %c0_i32_0 = arith.constant 0 : i32
    return %arg0, %arg1, %c0_i32 : i32, i32, i32
  }
}

</mosaic_0001>

<llo_original>
// kernel: tpu_custom_call.1
$region0: #{tpu_custom_call.1}
  #allocation0 [shape = 'u32[]', space=smem, size = 0x4, offset = 0x4, fixed_abs, tag = 'smem constant byte address 0x4 - core index']
  #allocation1 [shape = 'u32[72,128]{1,0:T(1,128)}', space=vmem, size = 0x9000, scoped, tag = 'internal scratch']
  %s0 = inlined_call_operand.hbm [shape: s32[2,2,24], index: 0, kind: input, shape index: {}]
  %s1 = inlined_call_operand.hbm [shape: bf16[2,24,512], index: 1, kind: input, shape index: {}]
  %s2 = inlined_call_operand.hbm [shape: f32[2,256,512], index: 2, kind: output, shape index: {}]
  %s3 = sld [smem:[#allocation0]]
  $region49: #{tpu_custom_call.1} parent=0
    _
  %s5 = ssub.s32 1, %s3
  %s6 = scalar_select 0, %s5, %s3
  $region1: #{tpu_custom_call.1} parent=0
    #allocation2 [shape = 'u8[2048]{0}', space=vmem, size = 0x800, scoped, tag = 'input window, operand 0']
    #allocation3 [shape = 's32[2]{0}', space=sflag, size = 0x8, scoped, tag = 'scoped memory for tpu_custom_call.1']
    #allocation4 [shape = 's32[2]{0}', space=sflag, size = 0x8, scoped, tag = 'scoped memory for tpu_custom_call.1']
    #allocation5 [shape = 'u8[49152]{0}', space=vmem, size = 0xc000, scoped, tag = 'input window, operand 1']
    #allocation6 [shape = 's32[2]{0}', space=sflag, size = 0x8, scoped, tag = 'scoped memory for tpu_custom_call.1']
    #allocation7 [shape = 'u8[1048576]{0}', space=vmem, size = 0x100000, scoped, tag = 'output window, operand 0']
    %7 = vsyncpa [#allocation3], 0
    %s8 = scalar_lea.sflag [#allocation3], 1
    %9 = vsyncpa %s8, 0
    %10 = vsyncpa [#allocation6], 0
    %s11 = scalar_lea.sflag [#allocation6], 1
    %12 = vsyncpa %s11, 0
    %13 = vsyncpa [#allocation4], 0
    %s14 = scalar_lea.sflag [#allocation4], 1
    %15 = vsyncpa %s14, 0
    loop: start=0, step=1, limit=4
    $region2: #{tpu_custom_call.1} parent=1 // loop_pre_header
      _
    $region3: #{tpu_custom_call.1} parent=1 // loop_header
      %s17 = sphi 0, %s21
      %p18 = scmp.ge.s32.totalorder %s17, 4
      %s24 = sphi 0, %s36
      %s25 = sphi 0, %s32
      %s26 = sphi 0, %s24
      %s27 = sphi 0, %s25
      %s28 = sphi 0, %s26
      %s29 = sphi 0, %s27
      %s39 = sphi 0, %s41
      %s42 = sphi 0, %s39
      %s43 = sphi 0, %s42
      %s59 = sphi 0, %s43
      %s65 = sphi 0, %s67
      %s68 = sphi 0, %s65
      %s69 = sphi 0, %s68
      %s85 = sphi 0, %s69
      %s93 = sphi 0, %s95
      %s96 = sphi 0, %s93
      %s97 = sphi 0, %s96
      %s113 = sphi 0, %s97
    $region4: #{tpu_custom_call.1} parent=1 // loop_header_branch
      %20 = sbr.rel (%p18) target = $region8
    $region5: #{tpu_custom_call.1} parent=1 // loop_body
      %s22 = ssub.s32 %s17, 1
      %s23 = ssub.s32 %s17, 2
      %s30 = sadd.s32 1, %s25
      %p31 = scmp.ge.s32.totalorder %s30, 1
      %s32 = scalar_select %p31, 0, %s30
      %s33 = sadd.s32 1, %s24
      %s34 = scalar_select %p31, %s33, %s24
      %p35 = scmp.ge.s32.totalorder %s34, 2
      %s36 = scalar_select %p35, 0, %s34
      %s37 = ssub.s32 %s24, %s36
      %p38 = scmp.eq.s32.totalorder %s37, 0
      %s40 = sadd.s32 %s39, 1
      %s41 = scalar_select %p38, %s39, %s40
      %p44 = pneg %p38
      %p45 = scmp.eq.s32.totalorder %s17, 1
      %p46 = por %p44, %p45
      %p47 = scmp.ne.s32.totalorder %s39, %s42
      %p48 = scmp.eq.s32.totalorder %s17, 0
      %p49 = por %p47, %p48
      %p50 = scmp.ne.s32.totalorder %s39, %s42
      %p51 = scmp.eq.s32.totalorder %s22, 1
      %p52 = por %p50, %p51
      %p53 = scmp.ne.s32.totalorder %s42, %s43
      %p54 = scmp.eq.s32.totalorder %s22, 0
      %p55 = por %p53, %p54
      %p56 = scmp.ne.s32.totalorder %s42, %s43
      %p57 = scmp.eq.s32.totalorder %s23, 1
      %p58 = por %p56, %p57
      %p60 = scmp.ne.s32.totalorder %s43, %s59
      %p61 = scmp.eq.s32.totalorder %s23, 0
      %p62 = por %p60, %p61
      %s63 = ssub.s32 %s24, %s36
      %p64 = scmp.eq.s32.totalorder %s63, 0
      %s66 = sadd.s32 %s65, 1
      %s67 = scalar_select %p64, %s65, %s66
      %p70 = pneg %p64
      %p71 = scmp.eq.s32.totalorder %s17, 1
      %p72 = por %p70, %p71
      %p73 = scmp.ne.s32.totalorder %s65, %s68
      %p74 = scmp.eq.s32.totalorder %s17, 0
      %p75 = por %p73, %p74
      %p76 = scmp.ne.s32.totalorder %s65, %s68
      %p77 = scmp.eq.s32.totalorder %s22, 1
      %p78 = por %p76, %p77
      %p79 = scmp.ne.s32.totalorder %s68, %s69
      %p80 = scmp.eq.s32.totalorder %s22, 0
      %p81 = por %p79, %p80
      %p82 = scmp.ne.s32.totalorder %s68, %s69
      %p83 = scmp.eq.s32.totalorder %s23, 1
      %p84 = por %p82, %p83
      %p86 = scmp.ne.s32.totalorder %s69, %s85
      %p87 = scmp.eq.s32.totalorder %s23, 0
      %p88 = por %p86, %p87
      %s89 = ssub.s32 %s24, %s36
      %s90 = ssub.s32 %s25, %s32
      %s91 = sor.u32 %s89, %s90
      %p92 = scmp.eq.s32.totalorder %s91, 0
      %s94 = sadd.s32 %s93, 1
      %s95 = scalar_select %p92, %s93, %s94
      %p98 = pneg %p92
      %p99 = scmp.eq.s32.totalorder %s17, 1
      %p100 = por %p98, %p99
      %p101 = scmp.ne.s32.totalorder %s93, %s96
      %p102 = scmp.eq.s32.totalorder %s17, 0
      %p103 = por %p101, %p102
      %p104 = scmp.ne.s32.totalorder %s93, %s96
      %p105 = scmp.eq.s32.totalorder %s22, 1
      %p106 = por %p104, %p105
      %p107 = scmp.ne.s32.totalorder %s96, %s97
      %p108 = scmp.eq.s32.totalorder %s22, 0
      %p109 = por %p107, %p108
      %p110 = scmp.ne.s32.totalorder %s96, %s97
      %p111 = scmp.eq.s32.totalorder %s23, 1
      %p112 = por %p110, %p111
      %p114 = scmp.ne.s32.totalorder %s97, %s113
      %p115 = scmp.eq.s32.totalorder %s23, 0
      %p116 = por %p114, %p115
      %p117 = scmp.le.s32.totalorder 1, %s17
      %p118 = scmp.lt.s32.totalorder %s17, 3
      %p119 = pnand %p117, %p118
      %p120 = pneg %p119
      // Predicated region
      $region9: #{tpu_custom_call.1} parent=5 // pred_check
        _
      $region10: #{tpu_custom_call.1} parent=5 // pred_check_branch
        %122 = sbr.rel (%p119) target = $region12
      $region11: #{tpu_custom_call.1} parent=5 // pred_region
        %s123 = ssub.s32 %s17, 1
      $region12: #{tpu_custom_call.1} parent=5 // pred_fallthru
        _
      %p124 = scmp.lt.s32.totalorder %s17, 2
      // Predicated region
      $region13: #{tpu_custom_call.1} parent=5 // pred_check
        %p125 = pneg %p124
      $region14: #{tpu_custom_call.1} parent=5 // pred_check_branch
        %127 = sbr.rel (%p125) target = $region16
      $region15: #{tpu_custom_call.1} parent=5 // pred_region
        // Predicated region
        $region17: #{tpu_custom_call.1} parent=15 // pred_check
          %p128 = pneg %p49
        $region18: #{tpu_custom_call.1} parent=15 // pred_check_branch
          %130 = sbr.rel (%p128) target = $region20
        $region19: #{tpu_custom_call.1} parent=15 // pred_region
          %s131 = sand.u32 %s39, 1
          %s132 = scalar_lea.sflag [#allocation3], %s131
          %s133 = sand.u32 %s39, 1
          %s134 = smul.addr %s133, 2
          %s135 = scalar_lea.vmem [#allocation2], %s134
          %137 = vsyncadd %s132, 0
          %s138 = smul.addr %s24, 2
          %s139 = scalar_lea.hbm %s0, %s138
          %s141 = sshll.u32 %s139, 4
          %s142 = int_to_ptr.hbm [resolvable:$true] %s141
          %s143 = sshll.u32 %s135, 4
          %s144 = int_to_ptr.vmem [resolvable:$true] %s143
          %146 = dma.hbm_to_vmem [thread:$0]  %s142, 32, %s144, %s132
        $region20: #{tpu_custom_call.1} parent=15 // pred_fallthru
          _
        // Predicated region
        $region21: #{tpu_custom_call.1} parent=15 // pred_check
          %p147 = pneg %p75
        $region22: #{tpu_custom_call.1} parent=15 // pred_check_branch
          %149 = sbr.rel (%p147) target = $region24
        $region23: #{tpu_custom_call.1} parent=15 // pred_region
          %s150 = sand.u32 %s65, 1
          %s151 = scalar_lea.sflag [#allocation6], %s150
          %s152 = sand.u32 %s65, 1
          %s153 = smul.addr %s152, 48
          %s154 = scalar_lea.vmem [#allocation5], %s153
          %156 = vsyncadd %s151, 0
          %s157 = smul.addr %s24, 12
          %s158 = smul.addr %s157, 4
          %s159 = scalar_lea.hbm %s1, %s158
          %s160 = sshll.u32 %s159, 4
          %s161 = int_to_ptr.hbm [resolvable:$true] %s160
          %s162 = sshll.u32 %s154, 4
          %s163 = int_to_ptr.vmem [resolvable:$true] %s162
          %168 = dma.hbm_to_vmem [thread:$0]  %s161, 768, %s163, %s151, 256, 256, 16
        $region24: #{tpu_custom_call.1} parent=15 // pred_fallthru
          _
      $region16: #{tpu_custom_call.1} parent=5 // pred_fallthru
        _
      %p169 = scmp.le.s32.totalorder 1, %s17
      %p170 = scmp.lt.s32.totalorder %s17, 3
      %p171 = pnand %p169, %p170
      %p172 = pneg %p171
      // Predicated region
      $region25: #{tpu_custom_call.1} parent=5 // pred_check
        _
      $region26: #{tpu_custom_call.1} parent=5 // pred_check_branch
        %174 = sbr.rel (%p171) target = $region28
      $region27: #{tpu_custom_call.1} parent=5 // pred_region
        %s175 = ssub.s32 %s17, 1
        %s176 = sand.u32 %s42, 1
        %s177 = scalar_lea.sflag [#allocation3], %s176
        %s178 = sand.u32 %s42, 1
        %s179 = smul.addr %s178, 2
        %s180 = scalar_lea.vmem [#allocation2], %s179
        // Predicated region
        $region29: #{tpu_custom_call.1} parent=27 // pred_check
          %p181 = pneg %p55
        $region30: #{tpu_custom_call.1} parent=27 // pred_check_branch
          %183 = sbr.rel (%p181) target = $region32
        $region31: #{tpu_custom_call.1} parent=27 // pred_region
          %185 = dma.done %s177, 32
        $region32: #{tpu_custom_call.1} parent=27 // pred_fallthru
          _
        %s186 = sand.u32 %s68, 1
        %s187 = scalar_lea.sflag [#allocation6], %s186
        %s188 = sand.u32 %s68, 1
        %s189 = smul.addr %s188, 48
        %s190 = scalar_lea.vmem [#allocation5], %s189
        // Predicated region
        $region33: #{tpu_custom_call.1} parent=27 // pred_check
          %p191 = pneg %p81
        $region34: #{tpu_custom_call.1} parent=27 // pred_check_branch
          %193 = sbr.rel (%p191) target = $region36
        $region35: #{tpu_custom_call.1} parent=27 // pred_region
          %195 = dma.done %s187, 768
        $region36: #{tpu_custom_call.1} parent=27 // pred_fallthru
          _
        %s196 = sand.u32 %s42, 1
        %s197 = scalar_lea.sflag [#allocation3], %s196
        %s198 = sand.u32 %s42, 1
        %s199 = smul.addr %s198, 2
        %s200 = scalar_lea.vmem [#allocation2], %s199
        %p201 = pneg %p55
        %p202 = pneg %p52
        %s203 = sand.u32 %s68, 1
        %s204 = scalar_lea.sflag [#allocation6], %s203
        %s205 = sand.u32 %s68, 1
        %s206 = smul.addr %s205, 48
        %s207 = scalar_lea.vmem [#allocation5], %s206
        %p208 = pneg %p81
        %p209 = pneg %p78
        %p210 = pneg %p109
        %p211 = pneg %p106
        %s212 = sand.u32 %s96, 1
        %s213 = scalar_lea.sflag [#allocation4], %s212
        %s214 = sand.u32 %s96, 1
        %s215 = smul.addr %s214, 1024
        %s216 = scalar_lea.vmem [#allocation7], %s215
        %s217 = smul.u32 32, %s27
        %v219 = vlaneseq
        %v220 = vshrl.u32 %v219, 7
        %v221 = vadd.s32 %v220, 8
        %v222 = vadd.s32 %v220, 16
        %v223 = vadd.s32 %v220, 24
        %v224 = vadd.s32 %v220, 32
        %v225 = vadd.s32 %v220, 40
        %v226 = vadd.s32 %v220, 48
        %v227 = vadd.s32 %v220, 56
        %v228 = vadd.s32 %v220, 64
        %v229 = vadd.s32 %v220, 72
        %v230 = vadd.s32 %v220, 80
        %v231 = vadd.s32 %v220, 88
        %v232 = vadd.s32 %v220, 96
        %v233 = vadd.s32 %v220, 104
        %v234 = vadd.s32 %v220, 112
        %v235 = vadd.s32 %v220, 120
        %v236 = vadd.s32 %v220, 128
        %v237 = vadd.s32 %v220, 136
        %v238 = vadd.s32 %v220, 144
        %v239 = vadd.s32 %v220, 152
        %v240 = vadd.s32 %v220, 160
        %v241 = vadd.s32 %v220, 168
        %v242 = vadd.s32 %v220, 176
        %v243 = vadd.s32 %v220, 184
        %v244 = vadd.s32 %v220, 192
        %v245 = vadd.s32 %v220, 200
        %v246 = vadd.s32 %v220, 208
        %v247 = vadd.s32 %v220, 216
        %v248 = vadd.s32 %v220, 224
        %v249 = vadd.s32 %v220, 232
        %v250 = vadd.s32 %v220, 240
        %v251 = vadd.s32 %v220, 248
        %s252 = smul.u32 %s27, 256
        %v253 = vstv %s252
        %v254 = vadd.s32 %v220, %v253
        %v255 = vadd.s32 %v221, %v253
        %v256 = vadd.s32 %v222, %v253
        %v257 = vadd.s32 %v223, %v253
        %v258 = vadd.s32 %v224, %v253
        %v259 = vadd.s32 %v225, %v253
        %v260 = vadd.s32 %v226, %v253
        %v261 = vadd.s32 %v227, %v253
        %v262 = vadd.s32 %v228, %v253
        %v263 = vadd.s32 %v229, %v253
        %v264 = vadd.s32 %v230, %v253
        %v265 = vadd.s32 %v231, %v253
        %v266 = vadd.s32 %v232, %v253
        %v267 = vadd.s32 %v233, %v253
        %v268 = vadd.s32 %v234, %v253
        %v269 = vadd.s32 %v235, %v253
        %v270 = vadd.s32 %v236, %v253
        %v271 = vadd.s32 %v237, %v253
        %v272 = vadd.s32 %v238, %v253
        %v273 = vadd.s32 %v239, %v253
        %v274 = vadd.s32 %v240, %v253
        %v275 = vadd.s32 %v241, %v253
        %v276 = vadd.s32 %v242, %v253
        %v277 = vadd.s32 %v243, %v253
        %v278 = vadd.s32 %v244, %v253
        %v279 = vadd.s32 %v245, %v253
        %v280 = vadd.s32 %v246, %v253
        %v281 = vadd.s32 %v247, %v253
        %v282 = vadd.s32 %v248, %v253
        %v283 = vadd.s32 %v249, %v253
        %v284 = vadd.s32 %v250, %v253
        %v285 = vadd.s32 %v251, %v253
        %v286 = vld [vmem:[%s180] sm:$0x3]
        %v287 = vperm.slane %v286, 0
        %vm288 = vcmp.ge.s32.totalorder %v254, %v287
        %vm289 = vcmp.ge.s32.totalorder %v255, %v287
        %vm290 = vcmp.ge.s32.totalorder %v256, %v287
        %vm291 = vcmp.ge.s32.totalorder %v257, %v287
        %vm292 = vcmp.ge.s32.totalorder %v258, %v287
        %vm293 = vcmp.ge.s32.totalorder %v259, %v287
        %vm294 = vcmp.ge.s32.totalorder %v260, %v287
        %vm295 = vcmp.ge.s32.totalorder %v261, %v287
        %vm296 = vcmp.ge.s32.totalorder %v262, %v287
        %vm297 = vcmp.ge.s32.totalorder %v263, %v287
        %vm298 = vcmp.ge.s32.totalorder %v264, %v287
        %vm299 = vcmp.ge.s32.totalorder %v265, %v287
        %vm300 = vcmp.ge.s32.totalorder %v266, %v287
        %vm301 = vcmp.ge.s32.totalorder %v267, %v287
        %vm302 = vcmp.ge.s32.totalorder %v268, %v287
        %vm303 = vcmp.ge.s32.totalorder %v269, %v287
        %vm304 = vcmp.ge.s32.totalorder %v270, %v287
        %vm305 = vcmp.ge.s32.totalorder %v271, %v287
        %vm306 = vcmp.ge.s32.totalorder %v272, %v287
        %vm307 = vcmp.ge.s32.totalorder %v273, %v287
        %vm308 = vcmp.ge.s32.totalorder %v274, %v287
        %vm309 = vcmp.ge.s32.totalorder %v275, %v287
        %vm310 = vcmp.ge.s32.totalorder %v276, %v287
        %vm311 = vcmp.ge.s32.totalorder %v277, %v287
        %vm312 = vcmp.ge.s32.totalorder %v278, %v287
        %vm313 = vcmp.ge.s32.totalorder %v279, %v287
        %vm314 = vcmp.ge.s32.totalorder %v280, %v287
        %vm315 = vcmp.ge.s32.totalorder %v281, %v287
        %vm316 = vcmp.ge.s32.totalorder %v282, %v287
        %vm317 = vcmp.ge.s32.totalorder %v283, %v287
        %vm318 = vcmp.ge.s32.totalorder %v284, %v287
        %vm319 = vcmp.ge.s32.totalorder %v285, %v287
        %v320 = vperm.slane %v286, 1
        %vm321 = vcmp.lt.s32.totalorder %v254, %v320
        %vm322 = vcmp.lt.s32.totalorder %v255, %v320
        %vm323 = vcmp.lt.s32.totalorder %v256, %v320
        %vm324 = vcmp.lt.s32.totalorder %v257, %v320
        %vm325 = vcmp.lt.s32.totalorder %v258, %v320
        %vm326 = vcmp.lt.s32.totalorder %v259, %v320
        %vm327 = vcmp.lt.s32.totalorder %v260, %v320
        %vm328 = vcmp.lt.s32.totalorder %v261, %v320
        %vm329 = vcmp.lt.s32.totalorder %v262, %v320
        %vm330 = vcmp.lt.s32.totalorder %v263, %v320
        %vm331 = vcmp.lt.s32.totalorder %v264, %v320
        %vm332 = vcmp.lt.s32.totalorder %v265, %v320
        %vm333 = vcmp.lt.s32.totalorder %v266, %v320
        %vm334 = vcmp.lt.s32.totalorder %v267, %v320
        %vm335 = vcmp.lt.s32.totalorder %v268, %v320
        %vm336 = vcmp.lt.s32.totalorder %v269, %v320
        %vm337 = vcmp.lt.s32.totalorder %v270, %v320
        %vm338 = vcmp.lt.s32.totalorder %v271, %v320
        %vm339 = vcmp.lt.s32.totalorder %v272, %v320
        %vm340 = vcmp.lt.s32.totalorder %v273, %v320
        %vm341 = vcmp.lt.s32.totalorder %v274, %v320
        %vm342 = vcmp.lt.s32.totalorder %v275, %v320
        %vm343 = vcmp.lt.s32.totalorder %v276, %v320
        %vm344 = vcmp.lt.s32.totalorder %v277, %v320
        %vm345 = vcmp.lt.s32.totalorder %v278, %v320
        %vm346 = vcmp.lt.s32.totalorder %v279, %v320
        %vm347 = vcmp.lt.s32.totalorder %v280, %v320
        %vm348 = vcmp.lt.s32.totalorder %v281, %v320
        %vm349 = vcmp.lt.s32.totalorder %v282, %v320
        %vm350 = vcmp.lt.s32.totalorder %v283, %v320
        %vm351 = vcmp.lt.s32.totalorder %v284, %v320
        %vm352 = vcmp.lt.s32.totalorder %v285, %v320
        %vm353 = vmand %vm288, %vm321
        %vm354 = vmand %vm289, %vm322
        %vm355 = vmand %vm290, %vm323
        %vm356 = vmand %vm291, %vm324
        %vm357 = vmand %vm292, %vm325
        %vm358 = vmand %vm293, %vm326
        %vm359 = vmand %vm294, %vm327
        %vm360 = vmand %vm295, %vm328
        %vm361 = vmand %vm296, %vm329
        %vm362 = vmand %vm297, %vm330
        %vm363 = vmand %vm298, %vm331
        %vm364 = vmand %vm299, %vm332
        %vm365 = vmand %vm300, %vm333
        %vm366 = vmand %vm301, %vm334
        %vm367 = vmand %vm302, %vm335
        %vm368 = vmand %vm303, %vm336
        %vm369 = vmand %vm304, %vm337
        %vm370 = vmand %vm305, %vm338
        %vm371 = vmand %vm306, %vm339
        %vm372 = vmand %vm307, %vm340
        %vm373 = vmand %vm308, %vm341
        %vm374 = vmand %vm309, %vm342
        %vm375 = vmand %vm310, %vm343
        %vm376 = vmand %vm311, %vm344
        %vm377 = vmand %vm312, %vm345
        %vm378 = vmand %vm313, %vm346
        %vm379 = vmand %vm314, %vm347
        %vm380 = vmand %vm315, %vm348
        %vm381 = vmand %vm316, %vm349
        %vm382 = vmand %vm317, %vm350
        %vm383 = vmand %vm318, %vm351
        %vm384 = vmand %vm319, %vm352
        %v385 = vsel %vm353, 1, 0
        %v386 = vsel %vm354, 1, 0
        %v387 = vsel %vm355, 1, 0
        %v388 = vsel %vm356, 1, 0
        %v389 = vsel %vm357, 1, 0
        %v390 = vsel %vm358, 1, 0
        %v391 = vsel %vm359, 1, 0
        %v392 = vsel %vm360, 1, 0
        %v393 = vsel %vm361, 1, 0
        %v394 = vsel %vm362, 1, 0
        %v395 = vsel %vm363, 1, 0
        %v396 = vsel %vm364, 1, 0
        %v397 = vsel %vm365, 1, 0
        %v398 = vsel %vm366, 1, 0
        %v399 = vsel %vm367, 1, 0
        %v400 = vsel %vm368, 1, 0
        %v401 = vsel %vm369, 1, 0
        %v402 = vsel %vm370, 1, 0
        %v403 = vsel %vm371, 1, 0
        %v404 = vsel %vm372, 1, 0
        %v405 = vsel %vm373, 1, 0
        %v406 = vsel %vm374, 1, 0
        %v407 = vsel %vm375, 1, 0
        %v408 = vsel %vm376, 1, 0
        %v409 = vsel %vm377, 1, 0
        %v410 = vsel %vm378, 1, 0
        %v411 = vsel %vm379, 1, 0
        %v412 = vsel %vm380, 1, 0
        %v413 = vsel %vm381, 1, 0
        %v414 = vsel %vm382, 1, 0
        %v415 = vsel %vm383, 1, 0
        %v416 = vsel %vm384, 1, 0
        %v417 = vcvt.s32.f32 %v385
        %v418 = vcvt.s32.f32 %v386
        %v419 = vcvt.s32.f32 %v387
        %v420 = vcvt.s32.f32 %v388
        %v421 = vcvt.s32.f32 %v389
        %v422 = vcvt.s32.f32 %v390
        %v423 = vcvt.s32.f32 %v391
        %v424 = vcvt.s32.f32 %v392
        %v425 = vcvt.s32.f32 %v393
        %v426 = vcvt.s32.f32 %v394
        %v427 = vcvt.s32.f32 %v395
        %v428 = vcvt.s32.f32 %v396
        %v429 = vcvt.s32.f32 %v397
        %v430 = vcvt.s32.f32 %v398
        %v431 = vcvt.s32.f32 %v399
        %v432 = vcvt.s32.f32 %v400
        %v433 = vcvt.s32.f32 %v401
        %v434 = vcvt.s32.f32 %v402
        %v435 = vcvt.s32.f32 %v403
        %v436 = vcvt.s32.f32 %v404
        %v437 = vcvt.s32.f32 %v405
        %v438 = vcvt.s32.f32 %v406
        %v439 = vcvt.s32.f32 %v407
        %v440 = vcvt.s32.f32 %v408
        %v441 = vcvt.s32.f32 %v409
        %v442 = vcvt.s32.f32 %v410
        %v443 = vcvt.s32.f32 %v411
        %v444 = vcvt.s32.f32 %v412
        %v445 = vcvt.s32.f32 %v413
        %v446 = vcvt.s32.f32 %v414
        %v447 = vcvt.s32.f32 %v415
        %v448 = vcvt.s32.f32 %v416
        %v449 = vpack.c.bf16 %v418, %v417
        %v450 = vpack.c.bf16 %v420, %v419
        %v451 = vpack.c.bf16 %v422, %v421
        %v452 = vpack.c.bf16 %v424, %v423
        %v453 = vpack.c.bf16 %v426, %v425
        %v454 = vpack.c.bf16 %v428, %v427
        %v455 = vpack.c.bf16 %v430, %v429
        %v456 = vpack.c.bf16 %v432, %v431
        %v457 = vpack.c.bf16 %v434, %v433
        %v458 = vpack.c.bf16 %v436, %v435
        %v459 = vpack.c.bf16 %v438, %v437
        %v460 = vpack.c.bf16 %v440, %v439
        %v461 = vpack.c.bf16 %v442, %v441
        %v462 = vpack.c.bf16 %v444, %v443
        %v463 = vpack.c.bf16 %v446, %v445
        %v464 = vpack.c.bf16 %v448, %v447
        %v465 = vld [vmem:[%s190] sm:$0xff]
        %v466 = vld [vmem:[%s190 + $0x8] sm:$0xff]
        %v467 = vld [vmem:[%s190 + $0x10] sm:$0xff]
        %v468 = vld [vmem:[%s190 + $0x18] sm:$0xff]
        %v469 = vld [vmem:[%s190 + $0x20] sm:$0xff]
        %v470 = vld [vmem:[%s190 + $0x28] sm:$0xff]
        %v477 = vunpack.c.l.b16 %v465
        %v478 = vunpack.c.h.b16 %v465
        %v479 = vunpack.c.l.b16 %v466
        %v480 = vunpack.c.h.b16 %v466
        %v481 = vunpack.c.l.b16 %v467
        %v482 = vunpack.c.h.b16 %v467
        %v483 = vunpack.c.l.b16 %v468
        %v484 = vunpack.c.h.b16 %v468
        %v485 = vunpack.c.l.b16 %v469
        %v486 = vunpack.c.h.b16 %v469
        %v487 = vunpack.c.l.b16 %v470
        %v488 = vunpack.c.h.b16 %v470
        %v489 = vpack.c.b16 %v481, %v477
        %v490 = vpack.c.b16 %v482, %v478
        %v491 = vpack.c.b16 %v483, %v479
        %v492 = vpack.c.b16 %v484, %v480
        %v493 = vpack.c.b16 %v485, %v485
        %v494 = vpack.c.b16 %v486, %v486
        %v495 = vpack.c.b16 %v487, %v487
        %v496 = vpack.c.b16 %v488, %v488
        %vm501 = vcmask 195584
        %v503 = vsel %vm501, %v449, 0
        %v506 = vsel %vm501, %v450, 0
        %v509 = vsel %vm501, %v451, 0
        %v512 = vsel %vm501, %v452, 0
        %v515 = vsel %vm501, %v453, 0
        %v518 = vsel %vm501, %v454, 0
        %v521 = vsel %vm501, %v455, 0
        %v524 = vsel %vm501, %v456, 0
        %v527 = vsel %vm501, %v457, 0
        %v530 = vsel %vm501, %v458, 0
        %v533 = vsel %vm501, %v459, 0
        %v536 = vsel %vm501, %v460, 0
        %v539 = vsel %vm501, %v461, 0
        %v542 = vsel %vm501, %v462, 0
        %v545 = vsel %vm501, %v463, 0
        %v548 = vsel %vm501, %v464, 0
        %vm550 = vcmask 1043456
        %v552 = vsel %vm550, %v493, 0
        %v555 = vsel %vm550, %v494, 0
        %v558 = vsel %vm550, %v495, 0
        %v561 = vsel %vm550, %v496, 0
        %563 = vmatpush.bf16.msra.mxu0 0
        %564 = vmatpush.bf16.msra.mxu0 0
        %565 = vmatpush.bf16.msra.mxu0 0
        %566 = vmatpush.bf16.msra.mxu0 0
        %567 = vmatpush.bf16.msra.mxu0 0
        %568 = vmatpush.bf16.msra.mxu0 0
        %569 = vmatpush.bf16.msra.mxu0 %v552
        %570 = vmatpush.bf16.msra.mxu0 %v489
        %571 = vmatmul.bf16.gmra.mxu0 %v503
        %v572 = vpop.f32.mrf.mxu0
        %v573 = vadd.f32 0.0, %v572
        %v574 = vpop.f32.mrf.mxu0
        %v575 = vadd.f32 0.0, %v574
        %576 = vmatmul.bf16.gmra.mxu0 %v506
        %v577 = vpop.f32.mrf.mxu0
        %v578 = vadd.f32 0.0, %v577
        %v579 = vpop.f32.mrf.mxu0
        %v580 = vadd.f32 0.0, %v579
        %581 = vmatmul.bf16.gmra.mxu0 %v509
        %v582 = vpop.f32.mrf.mxu0
        %v583 = vadd.f32 0.0, %v582
        %v584 = vpop.f32.mrf.mxu0
        %v585 = vadd.f32 0.0, %v584
        %586 = vmatmul.bf16.gmra.mxu0 %v512
        %v587 = vpop.f32.mrf.mxu0
        %v588 = vadd.f32 0.0, %v587
        %v589 = vpop.f32.mrf.mxu0
        %v590 = vadd.f32 0.0, %v589
        %591 = vmatmul.bf16.gmra.mxu0 %v515
        %v592 = vpop.f32.mrf.mxu0
        %v593 = vadd.f32 0.0, %v592
        %v594 = vpop.f32.mrf.mxu0
        %v595 = vadd.f32 0.0, %v594
        %596 = vmatmul.bf16.gmra.mxu0 %v518
        %v597 = vpop.f32.mrf.mxu0
        %v598 = vadd.f32 0.0, %v597
        %v599 = vpop.f32.mrf.mxu0
        %v600 = vadd.f32 0.0, %v599
        %601 = vmatmul.bf16.gmra.mxu0 %v521
        %v602 = vpop.f32.mrf.mxu0
        %v603 = vadd.f32 0.0, %v602
        %v604 = vpop.f32.mrf.mxu0
        %v605 = vadd.f32 0.0, %v604
        %606 = vmatmul.bf16.gmra.mxu0 %v524
        %v607 = vpop.f32.mrf.mxu0
        %v608 = vadd.f32 0.0, %v607
        %v609 = vpop.f32.mrf.mxu0
        %v610 = vadd.f32 0.0, %v609
        %611 = vmatmul.bf16.gmra.mxu0 %v527
        %v612 = vpop.f32.mrf.mxu0
        %v613 = vadd.f32 0.0, %v612
        %v614 = vpop.f32.mrf.mxu0
        %v615 = vadd.f32 0.0, %v614
        %616 = vmatmul.bf16.gmra.mxu0 %v530
        %v617 = vpop.f32.mrf.mxu0
        %v618 = vadd.f32 0.0, %v617
        %v619 = vpop.f32.mrf.mxu0
        %v620 = vadd.f32 0.0, %v619
        %621 = vmatmul.bf16.gmra.mxu0 %v533
        %v622 = vpop.f32.mrf.mxu0
        %v623 = vadd.f32 0.0, %v622
        %v624 = vpop.f32.mrf.mxu0
        %v625 = vadd.f32 0.0, %v624
        %626 = vmatmul.bf16.gmra.mxu0 %v536
        %v627 = vpop.f32.mrf.mxu0
        %v628 = vadd.f32 0.0, %v627
        %v629 = vpop.f32.mrf.mxu0
        %v630 = vadd.f32 0.0, %v629
        %631 = vmatmul.bf16.gmra.mxu0 %v539
        %v632 = vpop.f32.mrf.mxu0
        %v633 = vadd.f32 0.0, %v632
        %v634 = vpop.f32.mrf.mxu0
        %v635 = vadd.f32 0.0, %v634
        %636 = vmatmul.bf16.gmra.mxu0 %v542
        %v637 = vpop.f32.mrf.mxu0
        %v638 = vadd.f32 0.0, %v637
        %v639 = vpop.f32.mrf.mxu0
        %v640 = vadd.f32 0.0, %v639
        %641 = vmatmul.bf16.gmra.mxu0 %v545
        %v642 = vpop.f32.mrf.mxu0
        %v643 = vadd.f32 0.0, %v642
        %v644 = vpop.f32.mrf.mxu0
        %v645 = vadd.f32 0.0, %v644
        %646 = vmatmul.bf16.gmra.mxu0 %v548
        %v647 = vpop.f32.mrf.mxu0
        %v648 = vadd.f32 0.0, %v647
        %v649 = vpop.f32.mrf.mxu0
        %v650 = vadd.f32 0.0, %v649
        %651 = vdwg.mxu0
        %652 = vmatpush.bf16.msra.mxu0 0
        %653 = vmatpush.bf16.msra.mxu0 0
        %654 = vmatpush.bf16.msra.mxu0 0
        %655 = vmatpush.bf16.msra.mxu0 0
        %656 = vmatpush.bf16.msra.mxu0 0
        %657 = vmatpush.bf16.msra.mxu0 0
        %658 = vmatpush.bf16.msra.mxu0 %v555
        %659 = vmatpush.bf16.msra.mxu0 %v490
        %660 = vmatmul.bf16.gmra.mxu0 %v503
        %v661 = vpop.f32.mrf.mxu0
        %v662 = vadd.f32 0.0, %v661
        %v663 = vpop.f32.mrf.mxu0
        %v664 = vadd.f32 0.0, %v663
        %665 = vmatmul.bf16.gmra.mxu0 %v506
        %v666 = vpop.f32.mrf.mxu0
        %v667 = vadd.f32 0.0, %v666
        %v668 = vpop.f32.mrf.mxu0
        %v669 = vadd.f32 0.0, %v668
        %670 = vmatmul.bf16.gmra.mxu0 %v509
        %v671 = vpop.f32.mrf.mxu0
        %v672 = vadd.f32 0.0, %v671
        %v673 = vpop.f32.mrf.mxu0
        %v674 = vadd.f32 0.0, %v673
        %675 = vmatmul.bf16.gmra.mxu0 %v512
        %v676 = vpop.f32.mrf.mxu0
        %v677 = vadd.f32 0.0, %v676
        %v678 = vpop.f32.mrf.mxu0
        %v679 = vadd.f32 0.0, %v678
        %680 = vmatmul.bf16.gmra.mxu0 %v515
        %v681 = vpop.f32.mrf.mxu0
        %v682 = vadd.f32 0.0, %v681
        %v683 = vpop.f32.mrf.mxu0
        %v684 = vadd.f32 0.0, %v683
        %685 = vmatmul.bf16.gmra.mxu0 %v518
        %v686 = vpop.f32.mrf.mxu0
        %v687 = vadd.f32 0.0, %v686
        %v688 = vpop.f32.mrf.mxu0
        %v689 = vadd.f32 0.0, %v688
        %690 = vmatmul.bf16.gmra.mxu0 %v521
        %v691 = vpop.f32.mrf.mxu0
        %v692 = vadd.f32 0.0, %v691
        %v693 = vpop.f32.mrf.mxu0
        %v694 = vadd.f32 0.0, %v693
        %695 = vmatmul.bf16.gmra.mxu0 %v524
        %v696 = vpop.f32.mrf.mxu0
        %v697 = vadd.f32 0.0, %v696
        %v698 = vpop.f32.mrf.mxu0
        %v699 = vadd.f32 0.0, %v698
        %700 = vmatmul.bf16.gmra.mxu0 %v527
        %v701 = vpop.f32.mrf.mxu0
        %v702 = vadd.f32 0.0, %v701
        %v703 = vpop.f32.mrf.mxu0
        %v704 = vadd.f32 0.0, %v703
        %705 = vmatmul.bf16.gmra.mxu0 %v530
        %v706 = vpop.f32.mrf.mxu0
        %v707 = vadd.f32 0.0, %v706
        %v708 = vpop.f32.mrf.mxu0
        %v709 = vadd.f32 0.0, %v708
        %710 = vmatmul.bf16.gmra.mxu0 %v533
        %v711 = vpop.f32.mrf.mxu0
        %v712 = vadd.f32 0.0, %v711
        %v713 = vpop.f32.mrf.mxu0
        %v714 = vadd.f32 0.0, %v713
        %715 = vmatmul.bf16.gmra.mxu0 %v536
        %v716 = vpop.f32.mrf.mxu0
        %v717 = vadd.f32 0.0, %v716
        %v718 = vpop.f32.mrf.mxu0
        %v719 = vadd.f32 0.0, %v718
        %720 = vmatmul.bf16.gmra.mxu0 %v539
        %v721 = vpop.f32.mrf.mxu0
        %v722 = vadd.f32 0.0, %v721
        %v723 = vpop.f32.mrf.mxu0
        %v724 = vadd.f32 0.0, %v723
        %725 = vmatmul.bf16.gmra.mxu0 %v542
        %v726 = vpop.f32.mrf.mxu0
        %v727 = vadd.f32 0.0, %v726
        %v728 = vpop.f32.mrf.mxu0
        %v729 = vadd.f32 0.0, %v728
        %730 = vmatmul.bf16.gmra.mxu0 %v545
        %v731 = vpop.f32.mrf.mxu0
        %v732 = vadd.f32 0.0, %v731
        %v733 = vpop.f32.mrf.mxu0
        %v734 = vadd.f32 0.0, %v733
        %735 = vmatmul.bf16.gmra.mxu0 %v548
        %v736 = vpop.f32.mrf.mxu0
        %v737 = vadd.f32 0.0, %v736
        %v738 = vpop.f32.mrf.mxu0
        %v739 = vadd.f32 0.0, %v738
        %740 = vdwg.mxu0
        %741 = vmatpush.bf16.msra.mxu0 0
        %742 = vmatpush.bf16.msra.mxu0 0
        %743 = vmatpush.bf16.msra.mxu0 0
        %744 = vmatpush.bf16.msra.mxu0 0
        %745 = vmatpush.bf16.msra.mxu0 0
        %746 = vmatpush.bf16.msra.mxu0 0
        %747 = vmatpush.bf16.msra.mxu0 %v558
        %748 = vmatpush.bf16.msra.mxu0 %v491
        %749 = vmatmul.bf16.gmra.mxu0 %v503
        %v750 = vpop.f32.mrf.mxu0
        %v751 = vadd.f32 0.0, %v750
        %v752 = vpop.f32.mrf.mxu0
        %v753 = vadd.f32 0.0, %v752
        %754 = vmatmul.bf16.gmra.mxu0 %v506
        %v755 = vpop.f32.mrf.mxu0
        %v756 = vadd.f32 0.0, %v755
        %v757 = vpop.f32.mrf.mxu0
        %v758 = vadd.f32 0.0, %v757
        %759 = vmatmul.bf16.gmra.mxu0 %v509
        %v760 = vpop.f32.mrf.mxu0
        %v761 = vadd.f32 0.0, %v760
        %v762 = vpop.f32.mrf.mxu0
        %v763 = vadd.f32 0.0, %v762
        %764 = vmatmul.bf16.gmra.mxu0 %v512
        %v765 = vpop.f32.mrf.mxu0
        %v766 = vadd.f32 0.0, %v765
        %v767 = vpop.f32.mrf.mxu0
        %v768 = vadd.f32 0.0, %v767
        %769 = vmatmul.bf16.gmra.mxu0 %v515
        %v770 = vpop.f32.mrf.mxu0
        %v771 = vadd.f32 0.0, %v770
        %v772 = vpop.f32.mrf.mxu0
        %v773 = vadd.f32 0.0, %v772
        %774 = vmatmul.bf16.gmra.mxu0 %v518
        %v775 = vpop.f32.mrf.mxu0
        %v776 = vadd.f32 0.0, %v775
        %v777 = vpop.f32.mrf.mxu0
        %v778 = vadd.f32 0.0, %v777
        %779 = vmatmul.bf16.gmra.mxu0 %v521
        %v780 = vpop.f32.mrf.mxu0
        %v781 = vadd.f32 0.0, %v780
        %v782 = vpop.f32.mrf.mxu0
        %v783 = vadd.f32 0.0, %v782
        %784 = vmatmul.bf16.gmra.mxu0 %v524
        %v785 = vpop.f32.mrf.mxu0
        %v786 = vadd.f32 0.0, %v785
        %v787 = vpop.f32.mrf.mxu0
        %v788 = vadd.f32 0.0, %v787
        %789 = vmatmul.bf16.gmra.mxu0 %v527
        %v790 = vpop.f32.mrf.mxu0
        %v791 = vadd.f32 0.0, %v790
        %v792 = vpop.f32.mrf.mxu0
        %v793 = vadd.f32 0.0, %v792
        %794 = vmatmul.bf16.gmra.mxu0 %v530
        %v795 = vpop.f32.mrf.mxu0
        %v796 = vadd.f32 0.0, %v795
        %v797 = vpop.f32.mrf.mxu0
        %v798 = vadd.f32 0.0, %v797
        %799 = vmatmul.bf16.gmra.mxu0 %v533
        %v800 = vpop.f32.mrf.mxu0
        %v801 = vadd.f32 0.0, %v800
        %v802 = vpop.f32.mrf.mxu0
        %v803 = vadd.f32 0.0, %v802
        %804 = vmatmul.bf16.gmra.mxu0 %v536
        %v805 = vpop.f32.mrf.mxu0
        %v806 = vadd.f32 0.0, %v805
        %v807 = vpop.f32.mrf.mxu0
        %v808 = vadd.f32 0.0, %v807
        %809 = vmatmul.bf16.gmra.mxu0 %v539
        %v810 = vpop.f32.mrf.mxu0
        %v811 = vadd.f32 0.0, %v810
        %v812 = vpop.f32.mrf.mxu0
        %v813 = vadd.f32 0.0, %v812
        %814 = vmatmul.bf16.gmra.mxu0 %v542
        %v815 = vpop.f32.mrf.mxu0
        %v816 = vadd.f32 0.0, %v815
        %v817 = vpop.f32.mrf.mxu0
        %v818 = vadd.f32 0.0, %v817
        %819 = vmatmul.bf16.gmra.mxu0 %v545
        %v820 = vpop.f32.mrf.mxu0
        %v821 = vadd.f32 0.0, %v820
        %v822 = vpop.f32.mrf.mxu0
        %v823 = vadd.f32 0.0, %v822
        %824 = vmatmul.bf16.gmra.mxu0 %v548
        %v825 = vpop.f32.mrf.mxu0
        %v826 = vadd.f32 0.0, %v825
        %v827 = vpop.f32.mrf.mxu0
        %v828 = vadd.f32 0.0, %v827
        %829 = vdwg.mxu0
        %830 = vmatpush.bf16.msra.mxu0 0
        %831 = vmatpush.bf16.msra.mxu0 0
        %832 = vmatpush.bf16.msra.mxu0 0
        %833 = vmatpush.bf16.msra.mxu0 0
        %834 = vmatpush.bf16.msra.mxu0 0
        %835 = vmatpush.bf16.msra.mxu0 0
        %836 = vmatpush.bf16.msra.mxu0 %v561
        %837 = vmatpush.bf16.msra.mxu0 %v492
        %838 = vmatmul.bf16.gmra.mxu0 %v503
        %v839 = vpop.f32.mrf.mxu0
        %v840 = vadd.f32 0.0, %v839
        %v841 = vpop.f32.mrf.mxu0
        %v842 = vadd.f32 0.0, %v841
        %843 = vmatmul.bf16.gmra.mxu0 %v506
        %v844 = vpop.f32.mrf.mxu0
        %v845 = vadd.f32 0.0, %v844
        %v846 = vpop.f32.mrf.mxu0
        %v847 = vadd.f32 0.0, %v846
        %848 = vmatmul.bf16.gmra.mxu0 %v509
        %v849 = vpop.f32.mrf.mxu0
        %v850 = vadd.f32 0.0, %v849
        %v851 = vpop.f32.mrf.mxu0
        %v852 = vadd.f32 0.0, %v851
        %853 = vmatmul.bf16.gmra.mxu0 %v512
        %v854 = vpop.f32.mrf.mxu0
        %v855 = vadd.f32 0.0, %v854
        %v856 = vpop.f32.mrf.mxu0
        %v857 = vadd.f32 0.0, %v856
        %858 = vmatmul.bf16.gmra.mxu0 %v515
        %v859 = vpop.f32.mrf.mxu0
        %v860 = vadd.f32 0.0, %v859
        %v861 = vpop.f32.mrf.mxu0
        %v862 = vadd.f32 0.0, %v861
        %863 = vmatmul.bf16.gmra.mxu0 %v518
        %v864 = vpop.f32.mrf.mxu0
        %v865 = vadd.f32 0.0, %v864
        %v866 = vpop.f32.mrf.mxu0
        %v867 = vadd.f32 0.0, %v866
        %868 = vmatmul.bf16.gmra.mxu0 %v521
        %v869 = vpop.f32.mrf.mxu0
        %v870 = vadd.f32 0.0, %v869
        %v871 = vpop.f32.mrf.mxu0
        %v872 = vadd.f32 0.0, %v871
        %873 = vmatmul.bf16.gmra.mxu0 %v524
        %v874 = vpop.f32.mrf.mxu0
        %v875 = vadd.f32 0.0, %v874
        %v876 = vpop.f32.mrf.mxu0
        %v877 = vadd.f32 0.0, %v876
        %878 = vmatmul.bf16.gmra.mxu0 %v527
        %v879 = vpop.f32.mrf.mxu0
        %v880 = vadd.f32 0.0, %v879
        %v881 = vpop.f32.mrf.mxu0
        %v882 = vadd.f32 0.0, %v881
        %883 = vmatmul.bf16.gmra.mxu0 %v530
        %v884 = vpop.f32.mrf.mxu0
        %v885 = vadd.f32 0.0, %v884
        %v886 = vpop.f32.mrf.mxu0
        %v887 = vadd.f32 0.0, %v886
        %888 = vmatmul.bf16.gmra.mxu0 %v533
        %v889 = vpop.f32.mrf.mxu0
        %v890 = vadd.f32 0.0, %v889
        %v891 = vpop.f32.mrf.mxu0
        %v892 = vadd.f32 0.0, %v891
        %893 = vmatmul.bf16.gmra.mxu0 %v536
        %v894 = vpop.f32.mrf.mxu0
        %v895 = vadd.f32 0.0, %v894
        %v896 = vpop.f32.mrf.mxu0
        %v897 = vadd.f32 0.0, %v896
        %898 = vmatmul.bf16.gmra.mxu0 %v539
        %v899 = vpop.f32.mrf.mxu0
        %v900 = vadd.f32 0.0, %v899
        %v901 = vpop.f32.mrf.mxu0
        %v902 = vadd.f32 0.0, %v901
        %903 = vmatmul.bf16.gmra.mxu0 %v542
        %v904 = vpop.f32.mrf.mxu0
        %v905 = vadd.f32 0.0, %v904
        %v906 = vpop.f32.mrf.mxu0
        %v907 = vadd.f32 0.0, %v906
        %908 = vmatmul.bf16.gmra.mxu0 %v545
        %v909 = vpop.f32.mrf.mxu0
        %v910 = vadd.f32 0.0, %v909
        %v911 = vpop.f32.mrf.mxu0
        %v912 = vadd.f32 0.0, %v911
        %913 = vmatmul.bf16.gmra.mxu0 %v548
        %v914 = vpop.f32.mrf.mxu0
        %v915 = vadd.f32 0.0, %v914
        %v916 = vpop.f32.mrf.mxu0
        %v917 = vadd.f32 0.0, %v916
        %918 = vdwg.mxu0
        %919 = vst [vmem:[%s216] sm:$0xff] %v573
        %920 = vst [vmem:[%s216 + $0x8] sm:$0xff] %v662
        %921 = vst [vmem:[%s216 + $0x10] sm:$0xff] %v751
        %922 = vst [vmem:[%s216 + $0x18] sm:$0xff] %v840
        %923 = vst [vmem:[%s216 + $0x20] sm:$0xff] %v575
        %924 = vst [vmem:[%s216 + $0x28] sm:$0xff] %v664
        %925 = vst [vmem:[%s216 + $0x30] sm:$0xff] %v753
        %926 = vst [vmem:[%s216 + $0x38] sm:$0xff] %v842
        %927 = vst [vmem:[%s216 + $0x40] sm:$0xff] %v578
        %928 = vst [vmem:[%s216 + $0x48] sm:$0xff] %v667
        %929 = vst [vmem:[%s216 + $0x50] sm:$0xff] %v756
        %930 = vst [vmem:[%s216 + $0x58] sm:$0xff] %v845
        %931 = vst [vmem:[%s216 + $0x60] sm:$0xff] %v580
        %932 = vst [vmem:[%s216 + $0x68] sm:$0xff] %v669
        %933 = vst [vmem:[%s216 + $0x70] sm:$0xff] %v758
        %934 = vst [vmem:[%s216 + $0x78] sm:$0xff] %v847
        %935 = vst [vmem:[%s216 + $0x80] sm:$0xff] %v583
        %936 = vst [vmem:[%s216 + $0x88] sm:$0xff] %v672
        %937 = vst [vmem:[%s216 + $0x90] sm:$0xff] %v761
        %938 = vst [vmem:[%s216 + $0x98] sm:$0xff] %v850
        %939 = vst [vmem:[%s216 + $0xa0] sm:$0xff] %v585
        %940 = vst [vmem:[%s216 + $0xa8] sm:$0xff] %v674
        %941 = vst [vmem:[%s216 + $0xb0] sm:$0xff] %v763
        %942 = vst [vmem:[%s216 + $0xb8] sm:$0xff] %v852
        %943 = vst [vmem:[%s216 + $0xc0] sm:$0xff] %v588
        %944 = vst [vmem:[%s216 + $0xc8] sm:$0xff] %v677
        %945 = vst [vmem:[%s216 + $0xd0] sm:$0xff] %v766
        %946 = vst [vmem:[%s216 + $0xd8] sm:$0xff] %v855
        %947 = vst [vmem:[%s216 + $0xe0] sm:$0xff] %v590
        %948 = vst [vmem:[%s216 + $0xe8] sm:$0xff] %v679
        %949 = vst [vmem:[%s216 + $0xf0] sm:$0xff] %v768
        %950 = vst [vmem:[%s216 + $0xf8] sm:$0xff] %v857
        %951 = vst [vmem:[%s216 + $0x100] sm:$0xff] %v593
        %952 = vst [vmem:[%s216 + $0x108] sm:$0xff] %v682
        %953 = vst [vmem:[%s216 + $0x110] sm:$0xff] %v771
        %954 = vst [vmem:[%s216 + $0x118] sm:$0xff] %v860
        %955 = vst [vmem:[%s216 + $0x120] sm:$0xff] %v595
        %956 = vst [vmem:[%s216 + $0x128] sm:$0xff] %v684
        %957 = vst [vmem:[%s216 + $0x130] sm:$0xff] %v773
        %958 = vst [vmem:[%s216 + $0x138] sm:$0xff] %v862
        %959 = vst [vmem:[%s216 + $0x140] sm:$0xff] %v598
        %960 = vst [vmem:[%s216 + $0x148] sm:$0xff] %v687
        %961 = vst [vmem:[%s216 + $0x150] sm:$0xff] %v776
        %962 = vst [vmem:[%s216 + $0x158] sm:$0xff] %v865
        %963 = vst [vmem:[%s216 + $0x160] sm:$0xff] %v600
        %964 = vst [vmem:[%s216 + $0x168] sm:$0xff] %v689
        %965 = vst [vmem:[%s216 + $0x170] sm:$0xff] %v778
        %966 = vst [vmem:[%s216 + $0x178] sm:$0xff] %v867
        %967 = vst [vmem:[%s216 + $0x180] sm:$0xff] %v603
        %968 = vst [vmem:[%s216 + $0x188] sm:$0xff] %v692
        %969 = vst [vmem:[%s216 + $0x190] sm:$0xff] %v781
        %970 = vst [vmem:[%s216 + $0x198] sm:$0xff] %v870
        %971 = vst [vmem:[%s216 + $0x1a0] sm:$0xff] %v605
        %972 = vst [vmem:[%s216 + $0x1a8] sm:$0xff] %v694
        %973 = vst [vmem:[%s216 + $0x1b0] sm:$0xff] %v783
        %974 = vst [vmem:[%s216 + $0x1b8] sm:$0xff] %v872
        %975 = vst [vmem:[%s216 + $0x1c0] sm:$0xff] %v608
        %976 = vst [vmem:[%s216 + $0x1c8] sm:$0xff] %v697
        %977 = vst [vmem:[%s216 + $0x1d0] sm:$0xff] %v786
        %978 = vst [vmem:[%s216 + $0x1d8] sm:$0xff] %v875
        %979 = vst [vmem:[%s216 + $0x1e0] sm:$0xff] %v610
        %980 = vst [vmem:[%s216 + $0x1e8] sm:$0xff] %v699
        %981 = vst [vmem:[%s216 + $0x1f0] sm:$0xff] %v788
        %982 = vst [vmem:[%s216 + $0x1f8] sm:$0xff] %v877
        %983 = vst [vmem:[%s216 + $0x200] sm:$0xff] %v613
        %984 = vst [vmem:[%s216 + $0x208] sm:$0xff] %v702
        %985 = vst [vmem:[%s216 + $0x210] sm:$0xff] %v791
        %986 = vst [vmem:[%s216 + $0x218] sm:$0xff] %v880
        %987 = vst [vmem:[%s216 + $0x220] sm:$0xff] %v615
        %988 = vst [vmem:[%s216 + $0x228] sm:$0xff] %v704
        %989 = vst [vmem:[%s216 + $0x230] sm:$0xff] %v793
        %990 = vst [vmem:[%s216 + $0x238] sm:$0xff] %v882
        %991 = vst [vmem:[%s216 + $0x240] sm:$0xff] %v618
        %992 = vst [vmem:[%s216 + $0x248] sm:$0xff] %v707
        %993 = vst [vmem:[%s216 + $0x250] sm:$0xff] %v796
        %994 = vst [vmem:[%s216 + $0x258] sm:$0xff] %v885
        %995 = vst [vmem:[%s216 + $0x260] sm:$0xff] %v620
        %996 = vst [vmem:[%s216 + $0x268] sm:$0xff] %v709
        %997 = vst [vmem:[%s216 + $0x270] sm:$0xff] %v798
        %998 = vst [vmem:[%s216 + $0x278] sm:$0xff] %v887
        %999 = vst [vmem:[%s216 + $0x280] sm:$0xff] %v623
        %1000 = vst [vmem:[%s216 + $0x288] sm:$0xff] %v712
        %1001 = vst [vmem:[%s216 + $0x290] sm:$0xff] %v801
        %1002 = vst [vmem:[%s216 + $0x298] sm:$0xff] %v890
        %1003 = vst [vmem:[%s216 + $0x2a0] sm:$0xff] %v625
        %1004 = vst [vmem:[%s216 + $0x2a8] sm:$0xff] %v714
        %1005 = vst [vmem:[%s216 + $0x2b0] sm:$0xff] %v803
        %1006 = vst [vmem:[%s216 + $0x2b8] sm:$0xff] %v892
        %1007 = vst [vmem:[%s216 + $0x2c0] sm:$0xff] %v628
        %1008 = vst [vmem:[%s216 + $0x2c8] sm:$0xff] %v717
        %1009 = vst [vmem:[%s216 + $0x2d0] sm:$0xff] %v806
        %1010 = vst [vmem:[%s216 + $0x2d8] sm:$0xff] %v895
        %1011 = vst [vmem:[%s216 + $0x2e0] sm:$0xff] %v630
        %1012 = vst [vmem:[%s216 + $0x2e8] sm:$0xff] %v719
        %1013 = vst [vmem:[%s216 + $0x2f0] sm:$0xff] %v808
        %1014 = vst [vmem:[%s216 + $0x2f8] sm:$0xff] %v897
        %1015 = vst [vmem:[%s216 + $0x300] sm:$0xff] %v633
        %1016 = vst [vmem:[%s216 + $0x308] sm:$0xff] %v722
        %1017 = vst [vmem:[%s216 + $0x310] sm:$0xff] %v811
        %1018 = vst [vmem:[%s216 + $0x318] sm:$0xff] %v900
        %1019 = vst [vmem:[%s216 + $0x320] sm:$0xff] %v635
        %1020 = vst [vmem:[%s216 + $0x328] sm:$0xff] %v724
        %1021 = vst [vmem:[%s216 + $0x330] sm:$0xff] %v813
        %1022 = vst [vmem:[%s216 + $0x338] sm:$0xff] %v902
        %1023 = vst [vmem:[%s216 + $0x340] sm:$0xff] %v638
        %1024 = vst [vmem:[%s216 + $0x348] sm:$0xff] %v727
        %1025 = vst [vmem:[%s216 + $0x350] sm:$0xff] %v816
        %1026 = vst [vmem:[%s216 + $0x358] sm:$0xff] %v905
        %1027 = vst [vmem:[%s216 + $0x360] sm:$0xff] %v640
        %1028 = vst [vmem:[%s216 + $0x368] sm:$0xff] %v729
        %1029 = vst [vmem:[%s216 + $0x370] sm:$0xff] %v818
        %1030 = vst [vmem:[%s216 + $0x378] sm:$0xff] %v907
        %1031 = vst [vmem:[%s216 + $0x380] sm:$0xff] %v643
        %1032 = vst [vmem:[%s216 + $0x388] sm:$0xff] %v732
        %1033 = vst [vmem:[%s216 + $0x390] sm:$0xff] %v821
        %1034 = vst [vmem:[%s216 + $0x398] sm:$0xff] %v910
        %1035 = vst [vmem:[%s216 + $0x3a0] sm:$0xff] %v645
        %1036 = vst [vmem:[%s216 + $0x3a8] sm:$0xff] %v734
        %1037 = vst [vmem:[%s216 + $0x3b0] sm:$0xff] %v823
        %1038 = vst [vmem:[%s216 + $0x3b8] sm:$0xff] %v912
        %1039 = vst [vmem:[%s216 + $0x3c0] sm:$0xff] %v648
        %1040 = vst [vmem:[%s216 + $0x3c8] sm:$0xff] %v737
        %1041 = vst [vmem:[%s216 + $0x3d0] sm:$0xff] %v826
        %1042 = vst [vmem:[%s216 + $0x3d8] sm:$0xff] %v915
        %1043 = vst [vmem:[%s216 + $0x3e0] sm:$0xff] %v650
        %1044 = vst [vmem:[%s216 + $0x3e8] sm:$0xff] %v739
        %1045 = vst [vmem:[%s216 + $0x3f0] sm:$0xff] %v828
        %1046 = vst [vmem:[%s216 + $0x3f8] sm:$0xff] %v917
        %s1047 = sand.u32 %s96, 1
        %s1048 = scalar_lea.sflag [#allocation4], %s1047
        %s1049 = sand.u32 %s96, 1
        %s1050 = smul.addr %s1049, 1024
        %s1051 = scalar_lea.vmem [#allocation7], %s1050
        // Predicated region
        $region37: #{tpu_custom_call.1} parent=27 // pred_check
          %p1052 = pneg %p106
        $region38: #{tpu_custom_call.1} parent=27 // pred_check_branch
          %1054 = sbr.rel (%p1052) target = $region40
        $region39: #{tpu_custom_call.1} parent=27 // pred_region
          %s1055 = smul.u32 32, %s27
          %1057 = vsyncadd %s1048, 0
          %s1058 = smul.addr %s1055, 4
          %s1059 = smul.addr %s26, 128
          %s1060 = sadd.s32 %s1058, %s1059
          %s1061 = smul.addr %s1060, 8
          %s1062 = scalar_lea.hbm %s2, %s1061
          %s1063 = sshll.u32 %s1051, 4
          %s1064 = int_to_ptr.vmem [resolvable:$true] %s1063
          %s1065 = sshll.u32 %s1062, 4
          %s1066 = int_to_ptr.hbm [resolvable:$true] %s1065
          %1071 = dma.vmem_to_hbm [thread:$0]  %s1064, 16384, %s1066, %s1048, 512, 512, 32
        $region40: #{tpu_custom_call.1} parent=27 // pred_fallthru
          _
      $region28: #{tpu_custom_call.1} parent=5 // pred_fallthru
        _
      %p1072 = scmp.le.s32.totalorder 2, %s17
      // Predicated region
      $region41: #{tpu_custom_call.1} parent=5 // pred_check
        %p1073 = pneg %p1072
      $region42: #{tpu_custom_call.1} parent=5 // pred_check_branch
        %1075 = sbr.rel (%p1073) target = $region44
      $region43: #{tpu_custom_call.1} parent=5 // pred_region
        %s1076 = ssub.s32 %s17, 2
        // Predicated region
        $region45: #{tpu_custom_call.1} parent=43 // pred_check
          %p1077 = pneg %p112
        $region46: #{tpu_custom_call.1} parent=43 // pred_check_branch
          %1079 = sbr.rel (%p1077) target = $region48
        $region47: #{tpu_custom_call.1} parent=43 // pred_region
          %s1080 = sand.u32 %s97, 1
          %s1081 = scalar_lea.sflag [#allocation4], %s1080
          %s1082 = sand.u32 %s97, 1
          %s1083 = smul.addr %s1082, 1024
          %s1084 = scalar_lea.vmem [#allocation7], %s1083
          %1086 = dma.done %s1081, 16384
        $region48: #{tpu_custom_call.1} parent=43 // pred_fallthru
          _
      $region44: #{tpu_custom_call.1} parent=5 // pred_fallthru
        _
    $region6: #{tpu_custom_call.1} parent=1 // loop_footer
      %s21 = sadd.s32 1, %s17
    $region7: #{tpu_custom_call.1} parent=1 // loop_footer_branch
      %16 = sbr.rel target = $region3
    $region8: #{tpu_custom_call.1} parent=1 // loop_exit
      _
    %1087 = vsyncpa [#allocation3], 1
    %s1088 = scalar_lea.sflag [#allocation3], 1
    %1089 = vsyncpa %s1088, 1
    %1090 = vsyncpa [#allocation6], 1
    %s1091 = scalar_lea.sflag [#allocation6], 1
    %1092 = vsyncpa %s1091, 1
    %1093 = vsyncpa [#allocation4], 1
    %s1094 = scalar_lea.sflag [#allocation4], 1
    %1095 = vsyncpa %s1094, 1

</llo_original>
